<compile_context>
chip_gen: v7x
topology: tpu7x:2x2x1
jax: 0.10.0
libtpu: 0.0.40
codegen_flags: <defaults>
</compile_context>

<pallas_src>
import functools
import math

import jax
import jax.numpy as jnp
from jax import lax
from jax.experimental import pallas as pl
from jax.experimental.pallas import tpu as pltpu

D_K = 64
D_V = 64
LN_EPS = 1e-5


# ---------------------------------------------------------------------------
# VMEM budgeting helpers
# ---------------------------------------------------------------------------
def _vmem_capacity():
    try:
        info = pltpu.get_tpu_info()
        cap = getattr(info, "vmem_capacity_bytes", None)
        if cap:
            return int(cap)
    except Exception:
        pass
    return 64 * 1024 * 1024          # conservative default (v7x per-core VMEM)


def _vmem_budget(cap):
    # leave headroom for compiler-internal scratch / pipeline metadata
    return max(8 << 20, min(cap - (8 << 20), int(cap * 0.7)))


def _pick_tile(s, row_bytes, fixed_bytes, budget):
    """Largest tile t dividing s such that fixed_bytes + t*row_bytes <= budget."""
    cands = [s] + [t for t in (2048, 1024, 512, 256, 128, 64, 32, 16, 8)
                   if t < s and s % t == 0]
    for t in cands:
        if fixed_bytes + t * row_bytes <= budget:
            return t
    return cands[-1]


def _compiler_params(dim_sem, need_bytes, cap):
    kwargs = dict(dimension_semantics=dim_sem)
    if need_bytes > (30 << 20):      # above the ~32 MiB default scoped limit
        kwargs["vmem_limit_bytes"] = int(min(cap - (2 << 20),
                                             need_bytes + (16 << 20)))
    return pltpu.CompilerParams(**kwargs)


# ---------------------------------------------------------------------------
# Kernel 1a/1b: wide (heads-fused) linear projections, lane-dense outputs.
#   Q: one launch;  K & V (same seq length) share a launch.
# ---------------------------------------------------------------------------
def _q_proj_kernel(x_ref, w_ref, o_ref):
    # x: (1, ts, D) bf16 ; w: (D, H*dk) bf16 ; o: (1, ts, H*dk) bf16
    o_ref[0] = jnp.dot(x_ref[0], w_ref[...],
                       preferred_element_type=jnp.float32).astype(o_ref.dtype)


def _kv_proj_kernel(xk_ref, xv_ref, wk_ref, wv_ref, k_ref, v_ref):
    k_ref[0] = jnp.dot(xk_ref[0], wk_ref[...],
                       preferred_element_type=jnp.float32).astype(k_ref.dtype)
    v_ref[0] = jnp.dot(xv_ref[0], wv_ref[...],
                       preferred_element_type=jnp.float32).astype(v_ref.dtype)


def q_proj(x, w):
    B, S, D = x.shape
    N = w.shape[1]
    cap = _vmem_capacity()
    row = 2 * D * 2 + 2 * N * 2                      # x in + out (double-buffered bf16)
    fixed = 2 * D * N * 2                            # weight block
    ts = _pick_tile(S, row, fixed, _vmem_budget(cap))
    need = fixed + ts * row
    return pl.pallas_call(
        _q_proj_kernel,
        out_shape=jax.ShapeDtypeStruct((B, S, N), jnp.bfloat16),
        grid_spec=pltpu.PrefetchScalarGridSpec(
            num_scalar_prefetch=0,
            grid=(B, S // ts),
            in_specs=[
                pl.BlockSpec((1, ts, D), lambda b, s: (b, s, 0)),
                pl.BlockSpec((D, N), lambda b, s: (0, 0)),
            ],
            out_specs=pl.BlockSpec((1, ts, N), lambda b, s: (b, s, 0)),
        ),
        compiler_params=_compiler_params(("parallel", "parallel"), need, cap),
    )(x, w)


def kv_proj(xk, xv, wk, wv):
    B, S, D = xk.shape
    Nk, Nv = wk.shape[1], wv.shape[1]
    cap = _vmem_capacity()
    row = 2 * (2 * D * 2) + 2 * (Nk + Nv) * 2        # two x inputs + two outputs
    fixed = 2 * D * (Nk + Nv) * 2                    # both weight blocks
    ts = _pick_tile(S, row, fixed, _vmem_budget(cap))
    need = fixed + ts * row
    return pl.pallas_call(
        _kv_proj_kernel,
        out_shape=(jax.ShapeDtypeStruct((B, S, Nk), jnp.bfloat16),
                   jax.ShapeDtypeStruct((B, S, Nv), jnp.bfloat16)),
        grid_spec=pltpu.PrefetchScalarGridSpec(
            num_scalar_prefetch=0,
            grid=(B, S // ts),
            in_specs=[
                pl.BlockSpec((1, ts, D), lambda b, s: (b, s, 0)),
                pl.BlockSpec((1, ts, D), lambda b, s: (b, s, 0)),
                pl.BlockSpec((D, Nk), lambda b, s: (0, 0)),
                pl.BlockSpec((D, Nv), lambda b, s: (0, 0)),
            ],
            out_specs=[
                pl.BlockSpec((1, ts, Nk), lambda b, s: (b, s, 0)),
                pl.BlockSpec((1, ts, Nv), lambda b, s: (b, s, 0)),
            ],
        ),
        compiler_params=_compiler_params(("parallel", "parallel"), need, cap),
    )(xk, xv, wk, wv)


# ---------------------------------------------------------------------------
# Kernel 2: attention + output projection + residual + LayerNorm (fused).
#   grid = (B, Sq_tiles).  Q/K/V arrive lane-dense [*, S, H*d]; per-head
#   slices are static lane offsets.  Softmax stats in f32, exp in bf16,
#   attn weights stored bf16 (optional), context never leaves VMEM.
# ---------------------------------------------------------------------------
def _attn_kernel(q_ref, k_ref, v_ref, m_ref, res_ref, wfc_ref, out_ref, *rest,
                 n_heads, d_k, d_v, need_weights):
    if need_weights:
        attn_ref, ctx_acc = rest
    else:
        (ctx_acc,) = rest

    mask = m_ref[0] > 0                              # (tq, Sk) bool, shared by heads
    neg = jnp.float32(-1e9)

    for h in range(n_heads):                         # static unroll (small H)
        q = q_ref[0, :, h * d_k:(h + 1) * d_k]       # (tq, dk) bf16 (scale pre-folded)
        k = k_ref[0, :, h * d_k:(h + 1) * d_k]       # (Sk, dk) bf16
        v = v_ref[0, :, h * d_v:(h + 1) * d_v]       # (Sk, dv) bf16

        # QK^T without materializing k.T; f32 accumulation on the MXU.
        s = lax.dot_general(q, k, (((1,), (1,)), ((), ())),
                            preferred_element_type=jnp.float32)
        s = jnp.where(mask, neg, s)

        # numerically-stable softmax: stats in f32, exp/probs in bf16 (EUP bf16).
        m_max = jnp.max(s, axis=-1, keepdims=True)
        e = jnp.exp((s - m_max).astype(jnp.bfloat16))                # (tq, Sk) bf16
        l = jnp.sum(e.astype(jnp.float32), axis=-1, keepdims=True)   # f32 sum
        r = pl.reciprocal(l, approx=True).astype(jnp.bfloat16)       # (tq, 1)
        p = e * r                                                    # bf16 probs

        if need_weights:
            attn_ref[0, h] = p

        # context written at static lane offset (no end-of-loop concatenate).
        ctx_acc[:, h * d_v:(h + 1) * d_v] = jnp.dot(
            p, v, preferred_element_type=jnp.float32).astype(jnp.bfloat16)

    # fused epilogue: output projection + residual + LayerNorm (gamma=1, beta=0)
    out = jnp.dot(ctx_acc[...], wfc_ref[...], preferred_element_type=jnp.float32)
    out = out + res_ref[0]
    mean = jnp.mean(out, axis=-1, keepdims=True)
    cent = out - mean
    var = jnp.mean(cent * cent, axis=-1, keepdims=True)
    out_ref[0] = cent * lax.rsqrt(var + LN_EPS)


def attention_out_ln(Q, K, V, mask_i8, residual, w_fc, *, n_heads,
                     need_weights=True):
    B, Sq, HDk = Q.shape
    Sk = K.shape[1]
    HDv = V.shape[2]
    dk = HDk // n_heads
    dv = HDv // n_heads
    D = w_fc.shape[1]

    # -- derive tq from a per-generation VMEM budget -------------------------
    cap = _vmem_capacity()
    fixed = (2 * Sk * HDk * 2        # K block (double-buffered, bf16)
             + 2 * Sk * HDv * 2      # V block
             + 2 * HDv * D * 2)      # w_fc block
    row = (2 * HDk * 2               # Q in
           + 2 * Sk * 1              # mask in (int8)
           + 2 * D * 4               # residual in (f32)
           + 2 * D * 4               # LN output (f32)
           + HDv * 2                 # ctx VMEM scratch (bf16)
           + Sk * 16)                # in-kernel s/e/p temporaries w/ slack
    if need_weights:
        row += 2 * n_heads * Sk * 2  # attn out (bf16, double-buffered)
    tq = _pick_tile(Sq, row, fixed, _vmem_budget(cap))
    need = fixed + tq * row
    nq = Sq // tq

    kernel = functools.partial(_attn_kernel, n_heads=n_heads, d_k=dk, d_v=dv,
                               need_weights=need_weights)

    if need_weights:
        out_shape = (jax.ShapeDtypeStruct((B, Sq, D), jnp.float32),
                     jax.ShapeDtypeStruct((B, n_heads, Sq, Sk), jnp.bfloat16))
        out_specs = [pl.BlockSpec((1, tq, D), lambda b, q: (b, q, 0)),
                     pl.BlockSpec((1, n_heads, tq, Sk), lambda b, q: (b, 0, q, 0))]
    else:
        out_shape = jax.ShapeDtypeStruct((B, Sq, D), jnp.float32)
        out_specs = pl.BlockSpec((1, tq, D), lambda b, q: (b, q, 0))

    res = pl.pallas_call(
        kernel,
        out_shape=out_shape,
        grid_spec=pltpu.PrefetchScalarGridSpec(
            num_scalar_prefetch=0,
            grid=(B, nq),
            in_specs=[
                pl.BlockSpec((1, tq, HDk), lambda b, q: (b, q, 0)),
                pl.BlockSpec((1, Sk, HDk), lambda b, q: (b, 0, 0)),
                pl.BlockSpec((1, Sk, HDv), lambda b, q: (b, 0, 0)),
                pl.BlockSpec((1, tq, Sk), lambda b, q: (b, q, 0)),
                pl.BlockSpec((1, tq, D), lambda b, q: (b, q, 0)),
                pl.BlockSpec((HDv, D), lambda b, q: (0, 0)),
            ],
            out_specs=out_specs,
            scratch_shapes=[pltpu.VMEM((tq, HDv), jnp.bfloat16)],
        ),
        compiler_params=_compiler_params(("parallel", "parallel"), need, cap),
    )(Q, K, V, mask_i8, residual, w_fc)

    if need_weights:
        out, attn = res
        return out, attn
    return res, None


# ---------------------------------------------------------------------------
# Module wrapper (mirrors MultiHeadAttention.forward)
# ---------------------------------------------------------------------------
def multi_head_attention(params, input_Q, input_K, input_V, attn_mask, n_heads,
                         need_weights=True):
    """input_Q/K/V: [B, S, d_model] f32; attn_mask: [B, Sq, Sk] bool (True = masked).
    Returns (output [B, Sq, d_model] f32, attn [B, n_heads, Sq, Sk] bf16 or None)."""
    bf = jnp.bfloat16

    # fold the 1/sqrt(d_k) softmax scale into W_Q (exact: power of two)
    wq = (params["W_Q"] * (1.0 / math.sqrt(D_K))).astype(bf)
    wk = params["W_K"].astype(bf)
    wv = params["W_V"].astype(bf)
    wo = params["fc"].astype(bf)

    Q = q_proj(input_Q.astype(bf), wq)                       # [B, Sq, H*dk] bf16
    K, V = kv_proj(input_K.astype(bf), input_V.astype(bf), wk, wv)  # [B, Sk, H*d] bf16

    mask_i8 = attn_mask.astype(jnp.int8)                     # compact, shared by heads
    out, attn = attention_out_ln(Q, K, V, mask_i8,
                                 input_Q.astype(jnp.float32), wo,
                                 n_heads=n_heads, need_weights=need_weights)
    return out, attn


# pure-JAX reference (bf16 matmuls like the kernel; softmax/LN in f32)
def _reference(params, input_Q, input_K, input_V, attn_mask, n_heads):
    B, Sq, d_model = input_Q.shape
    Sk = input_K.shape[1]
    bf = jnp.bfloat16
    xq, xk, xv = input_Q.astype(bf), input_K.astype(bf), input_V.astype(bf)
    wq, wk, wv = params["W_Q"].astype(bf), params["W_K"].astype(bf), params["W_V"].astype(bf)
    wo = params["fc"].astype(bf)

    Q = jnp.dot(xq, wq, preferred_element_type=jnp.float32).astype(bf)
    K = jnp.dot(xk, wk, preferred_element_type=jnp.float32).astype(bf)
    V = jnp.dot(xv, wv, preferred_element_type=jnp.float32).astype(bf)
    Q = Q.reshape(B, Sq, n_heads, D_K).transpose(0, 2, 1, 3)
    K = K.reshape(B, Sk, n_heads, D_K).transpose(0, 2, 1, 3)
    V = V.reshape(B, Sk, n_heads, D_V).transpose(0, 2, 1, 3)

    scores = jnp.einsum("bhqd,bhkd->bhqk", Q, K,
                        preferred_element_type=jnp.float32) / jnp.sqrt(jnp.float32(D_K))
    scores = jnp.where(attn_mask[:, None, :, :], jnp.float32(-1e9), scores)
    attn = jax.nn.softmax(scores, axis=-1)
    ctx = jnp.einsum("bhqk,bhkd->bhqd", attn.astype(bf), V,
                     preferred_element_type=jnp.float32).astype(bf)
    ctx = ctx.transpose(0, 2, 1, 3).reshape(B, Sq, n_heads * D_V)
    out = jnp.dot(ctx, wo, preferred_element_type=jnp.float32) + input_Q
    mean = jnp.mean(out, axis=-1, keepdims=True)
    var = jnp.mean((out - mean) ** 2, axis=-1, keepdims=True)
    return (out - mean) / jnp.sqrt(var + LN_EPS), attn


if __name__ == "__main__":
    B, S, d_model, n_heads = 2, 8, 32, 2

    key = jax.random.PRNGKey(0)
    k_q, k_k, k_v, k_wq, k_wk, k_wv, k_fc = jax.random.split(key, 7)

    # deterministic parameter init (nn.Linear, bias=False), stored [in, out]
    scale = 1.0 / math.sqrt(d_model)
    fc_scale = 1.0 / math.sqrt(n_heads * D_V)
    params = {
        "W_Q": jax.random.uniform(k_wq, (d_model, D_K * n_heads), jnp.float32, -scale, scale),
        "W_K": jax.random.uniform(k_wk, (d_model, D_K * n_heads), jnp.float32, -scale, scale),
        "W_V": jax.random.uniform(k_wv, (d_model, D_V * n_heads), jnp.float32, -scale, scale),
        "fc": jax.random.uniform(k_fc, (n_heads * D_V, d_model), jnp.float32, -fc_scale, fc_scale),
    }

    input_Q = jax.random.normal(k_q, (B, S, d_model), jnp.float32)
    input_K = jax.random.normal(k_k, (B, S, d_model), jnp.float32)
    input_V = jax.random.normal(k_v, (B, S, d_model), jnp.float32)

    # padding-style mask: last 2 key positions are masked (True = masked)
    key_pad = jnp.arange(S) >= (S - 2)                                  # [S]
    attn_mask = jnp.broadcast_to(key_pad[None, None, :], (B, S, S))     # [B, Sq, Sk] bool

    out, attn = multi_head_attention(params, input_Q, input_K, input_V,
                                     attn_mask, n_heads)
    out = jax.block_until_ready(out)
    attn = jax.block_until_ready(attn)

    ref_out, ref_attn = _reference(params, input_Q, input_K, input_V,
                                   attn_mask, n_heads)

    assert out.shape == (B, S, d_model)
    assert attn.shape == (B, n_heads, S, S)
    attn_f32 = attn.astype(jnp.float32)
    # bf16 matmuls + bf16 exp/probs + approx reciprocal => loose tolerances
    assert jnp.allclose(attn_f32, ref_attn, atol=1.5e-2, rtol=1.5e-2), \
        f"attn max err {jnp.max(jnp.abs(attn_f32 - ref_attn))}"
    assert jnp.allclose(out, ref_out, atol=3e-2, rtol=3e-2), \
        f"out max err {jnp.max(jnp.abs(out - ref_out))}"

    print("KERNEL_OK")
</pallas_src>

<mosaic_0001>
module attributes {stable_mosaic.version = 11 : i64} {
  func.func @_q_proj_kernel(%arg0: i32, %arg1: i32, %arg2: memref<1x8x32xbf16, #tpu.memory_space<vmem>>, %arg3: memref<32x128xbf16, #tpu.memory_space<vmem>>, %arg4: memref<1x8x128xbf16, #tpu.memory_space<vmem>>) attributes {dimension_semantics = [#tpu.dimension_semantics<parallel>, #tpu.dimension_semantics<parallel>], iteration_bounds = array<i64: 2, 1>, scalar_prefetch = 0 : i64, scratch_operands = 0 : i64, tpu.core_type = #tpu.core_type<tc>, window_params = [{transform_indices = @transform_0, window_bounds = array<i64: 1, 8, 32>}, {pipeline_mode = #tpu.pipeline_mode<synchronous>, transform_indices = @transform_1, window_bounds = array<i64: 32, 128>}, {transform_indices = @transform_2, window_bounds = array<i64: 1, 8, 128>}]} {
    %c0 = arith.constant 0 : index
    %c0_0 = arith.constant 0 : index
    %c0_1 = arith.constant 0 : index
    %0 = vector.load %arg2[%c0, %c0_0, %c0_1] : memref<1x8x32xbf16, #tpu.memory_space<vmem>>, vector<1x8x32xbf16>
    %1 = vector.shape_cast %0 : vector<1x8x32xbf16> to vector<8x32xbf16>
    %c0_2 = arith.constant 0 : index
    %c0_3 = arith.constant 0 : index
    %2 = vector.load %arg3[%c0_2, %c0_3] : memref<32x128xbf16, #tpu.memory_space<vmem>>, vector<32x128xbf16>
    %cst = arith.constant dense<0.000000e+00> : vector<8x128xf32>
    %3 = tpu.matmul %1, %2, %cst {dimension_numbers = #tpu.dot_dimension_numbers<[1], [0], [0], [1], [0, 0, 1, 1], [], []>} : vector<8x32xbf16>, vector<32x128xbf16>, vector<8x128xf32> -> vector<8x128xf32>
    %4 = arith.truncf %3 : vector<8x128xf32> to vector<8x128xbf16>
    %c0_4 = arith.constant 0 : index
    %c0_5 = arith.constant 0 : index
    %c0_6 = arith.constant 0 : index
    %5 = vector.load %arg4[%c0_4, %c0_5, %c0_6] : memref<1x8x128xbf16, #tpu.memory_space<vmem>>, vector<1x8x128xbf16>
    %6 = vector.shape_cast %5 : vector<1x8x128xbf16> to vector<8x128xbf16>
    %7 = vector.shape_cast %4 : vector<8x128xbf16> to vector<1x8x128xbf16>
    tpu.vector_store %arg4[%c0_4, %c0_5, %c0_6], %7 {strides = array<i32>} : memref<1x8x128xbf16, #tpu.memory_space<vmem>>, vector<1x8x128xbf16>,
    return
  }
  func.func @transform_0(%arg0: i32, %arg1: i32) -> (i32, i32, i32) {
    %c0_i32 = arith.constant 0 : i32
    %c0_i32_0 = arith.constant 0 : i32
    return %arg0, %arg1, %c0_i32 : i32, i32, i32
  }
  func.func @transform_1(%arg0: i32, %arg1: i32) -> (i32, i32) {
    %c0_i32 = arith.constant 0 : i32
    %c0_i32_0 = arith.constant 0 : i32
    %c0_i32_1 = arith.constant 0 : i32
    return %c0_i32, %c0_i32_0 : i32, i32
  }
  func.func @transform_2(%arg0: i32, %arg1: i32) -> (i32, i32, i32) {
    %c0_i32 = arith.constant 0 : i32
    %c0_i32_0 = arith.constant 0 : i32
    return %arg0, %arg1, %c0_i32 : i32, i32, i32
  }
}

</mosaic_0001>

<llo_original>
// kernel: tpu_custom_call.1
$region0: #{tpu_custom_call.1}
  #allocation0 [shape = 'u32[]', space=smem, size = 0x4, offset = 0x4, fixed_abs, tag = 'smem constant byte address 0x4 - core index']
  #allocation1 [shape = 'u32[144,128]{1,0:T(1,128)}', space=vmem, size = 0x12000, scoped, tag = 'internal scratch']
  %s0 = inlined_call_operand.hbm [shape: bf16[2,8,32], index: 0, kind: input, shape index: {}]
  %s1 = inlined_call_operand.hbm [shape: bf16[32,128], index: 1, kind: input, shape index: {}]
  %s2 = inlined_call_operand.hbm [shape: bf16[2,8,128], index: 2, kind: output, shape index: {}]
  %s3 = sld [smem:[#allocation0]]
  $region49: #{tpu_custom_call.1} parent=0
    _
  %s5 = ssub.s32 1, %s3
  %s6 = scalar_select 0, %s5, %s3
  $region1: #{tpu_custom_call.1} parent=0
    #allocation2 [shape = 'u8[4096]{0}', space=vmem, size = 0x1000, scoped, tag = 'input window, operand 0']
    #allocation3 [shape = 's32[2]{0}', space=sflag, size = 0x8, scoped, tag = 'scoped memory for tpu_custom_call.1']
    #allocation4 [shape = 's32[2]{0}', space=sflag, size = 0x8, scoped, tag = 'scoped memory for tpu_custom_call.1']
    #allocation5 [shape = 'u8[8192]{0}', space=vmem, size = 0x2000, scoped, tag = 'input window, operand 1, single buffered']
    #allocation6 [shape = 's32[1]{0}', space=sflag, size = 0x4, scoped, tag = 'scoped memory for tpu_custom_call.1']
    #allocation7 [shape = 'u8[4096]{0}', space=vmem, size = 0x1000, scoped, tag = 'output window, operand 0']
    %7 = vsyncpa [#allocation3], 0
    %s8 = scalar_lea.sflag [#allocation3], 1
    %9 = vsyncpa %s8, 0
    %10 = vsyncpa [#allocation6], 0
    %11 = vsyncpa [#allocation4], 0
    %s12 = scalar_lea.sflag [#allocation4], 1
    %13 = vsyncpa %s12, 0
    loop: start=0, step=1, limit=4
    $region2: #{tpu_custom_call.1} parent=1 // loop_pre_header
      _
    $region3: #{tpu_custom_call.1} parent=1 // loop_header
      %s15 = sphi 0, %s19
      %p16 = scmp.ge.s32.totalorder %s15, 4
      %s22 = sphi 0, %s34
      %s23 = sphi 0, %s30
      %s24 = sphi 0, %s22
      %s25 = sphi 0, %s23
      %s26 = sphi 0, %s24
      %s27 = sphi 0, %s25
      %s39 = sphi 0, %s41
      %s42 = sphi 0, %s39
      %s43 = sphi 0, %s42
      %s59 = sphi 0, %s43
      %s63 = sphi 0, %s63
      %s65 = sphi 0, %s63
      %s66 = sphi 0, %s65
      %s80 = sphi 0, %s66
      %s88 = sphi 0, %s90
      %s91 = sphi 0, %s88
      %s92 = sphi 0, %s91
      %s108 = sphi 0, %s92
    $region4: #{tpu_custom_call.1} parent=1 // loop_header_branch
      %18 = sbr.rel (%p16) target = $region8
    $region5: #{tpu_custom_call.1} parent=1 // loop_body
      %s20 = ssub.s32 %s15, 1
      %s21 = ssub.s32 %s15, 2
      %s28 = sadd.s32 1, %s23
      %p29 = scmp.ge.s32.totalorder %s28, 1
      %s30 = scalar_select %p29, 0, %s28
      %s31 = sadd.s32 1, %s22
      %s32 = scalar_select %p29, %s31, %s22
      %p33 = scmp.ge.s32.totalorder %s32, 2
      %s34 = scalar_select %p33, 0, %s32
      %s35 = ssub.s32 %s22, %s34
      %s36 = ssub.s32 %s23, %s30
      %s37 = sor.u32 %s35, %s36
      %p38 = scmp.eq.s32.totalorder %s37, 0
      %s40 = sadd.s32 %s39, 1
      %s41 = scalar_select %p38, %s39, %s40
      %p44 = pneg %p38
      %p45 = scmp.eq.s32.totalorder %s15, 1
      %p46 = por %p44, %p45
      %p47 = scmp.ne.s32.totalorder %s39, %s42
      %p48 = scmp.eq.s32.totalorder %s15, 0
      %p49 = por %p47, %p48
      %p50 = scmp.ne.s32.totalorder %s39, %s42
      %p51 = scmp.eq.s32.totalorder %s20, 1
      %p52 = por %p50, %p51
      %p53 = scmp.ne.s32.totalorder %s42, %s43
      %p54 = scmp.eq.s32.totalorder %s20, 0
      %p55 = por %p53, %p54
      %p56 = scmp.ne.s32.totalorder %s42, %s43
      %p57 = scmp.eq.s32.totalorder %s21, 1
      %p58 = por %p56, %p57
      %p60 = scmp.ne.s32.totalorder %s43, %s59
      %p61 = scmp.eq.s32.totalorder %s21, 0
      %p62 = por %p60, %p61
      %s64 = sadd.s32 %s63, 1
      %p67 = scmp.eq.s32.totalorder %s15, 1
      %p68 = scmp.ne.s32.totalorder %s63, %s65
      %p69 = scmp.eq.s32.totalorder %s15, 0
      %p70 = por %p68, %p69
      %p71 = scmp.ne.s32.totalorder %s63, %s65
      %p72 = scmp.eq.s32.totalorder %s20, 1
      %p73 = por %p71, %p72
      %p74 = scmp.ne.s32.totalorder %s65, %s66
      %p75 = scmp.eq.s32.totalorder %s20, 0
      %p76 = por %p74, %p75
      %p77 = scmp.ne.s32.totalorder %s65, %s66
      %p78 = scmp.eq.s32.totalorder %s21, 1
      %p79 = por %p77, %p78
      %p81 = scmp.ne.s32.totalorder %s66, %s80
      %p82 = scmp.eq.s32.totalorder %s21, 0
      %p83 = por %p81, %p82
      %s84 = ssub.s32 %s22, %s34
      %s85 = ssub.s32 %s23, %s30
      %s86 = sor.u32 %s84, %s85
      %p87 = scmp.eq.s32.totalorder %s86, 0
      %s89 = sadd.s32 %s88, 1
      %s90 = scalar_select %p87, %s88, %s89
      %p93 = pneg %p87
      %p94 = scmp.eq.s32.totalorder %s15, 1
      %p95 = por %p93, %p94
      %p96 = scmp.ne.s32.totalorder %s88, %s91
      %p97 = scmp.eq.s32.totalorder %s15, 0
      %p98 = por %p96, %p97
      %p99 = scmp.ne.s32.totalorder %s88, %s91
      %p100 = scmp.eq.s32.totalorder %s20, 1
      %p101 = por %p99, %p100
      %p102 = scmp.ne.s32.totalorder %s91, %s92
      %p103 = scmp.eq.s32.totalorder %s20, 0
      %p104 = por %p102, %p103
      %p105 = scmp.ne.s32.totalorder %s91, %s92
      %p106 = scmp.eq.s32.totalorder %s21, 1
      %p107 = por %p105, %p106
      %p109 = scmp.ne.s32.totalorder %s92, %s108
      %p110 = scmp.eq.s32.totalorder %s21, 0
      %p111 = por %p109, %p110
      %p112 = scmp.le.s32.totalorder 1, %s15
      %p113 = scmp.lt.s32.totalorder %s15, 3
      %p114 = pnand %p112, %p113
      %p115 = pneg %p114
      // Predicated region
      $region9: #{tpu_custom_call.1} parent=5 // pred_check
        _
      $region10: #{tpu_custom_call.1} parent=5 // pred_check_branch
        %117 = sbr.rel (%p114) target = $region12
      $region11: #{tpu_custom_call.1} parent=5 // pred_region
        %s118 = ssub.s32 %s15, 1
        // Predicated region
        $region13: #{tpu_custom_call.1} parent=11 // pred_check
          %p119 = pneg %p76
        $region14: #{tpu_custom_call.1} parent=11 // pred_check_branch
          %121 = sbr.rel (%p119) target = $region16
        $region15: #{tpu_custom_call.1} parent=11 // pred_region
          %s123 = ssub.s32 256, 256
          %124 = vsyncadd [#allocation6], %s123
          %s125 = sshll.u32 [#allocation5], 4
          %s126 = int_to_ptr.vmem [resolvable:$true] %s125
          %131 = dma.hbm_to_vmem [thread:$0]  %s1, 256, %s126, [#allocation6], 64, 64, 4
        $region16: #{tpu_custom_call.1} parent=11 // pred_fallthru
          _
      $region12: #{tpu_custom_call.1} parent=5 // pred_fallthru
        _
      %p132 = scmp.lt.s32.totalorder %s15, 2
      // Predicated region
      $region17: #{tpu_custom_call.1} parent=5 // pred_check
        %p133 = pneg %p132
      $region18: #{tpu_custom_call.1} parent=5 // pred_check_branch
        %135 = sbr.rel (%p133) target = $region20
      $region19: #{tpu_custom_call.1} parent=5 // pred_region
        // Predicated region
        $region21: #{tpu_custom_call.1} parent=19 // pred_check
          %p136 = pneg %p49
        $region22: #{tpu_custom_call.1} parent=19 // pred_check_branch
          %138 = sbr.rel (%p136) target = $region24
        $region23: #{tpu_custom_call.1} parent=19 // pred_region
          %s139 = sand.u32 %s39, 1
          %s140 = scalar_lea.sflag [#allocation3], %s139
          %s141 = sand.u32 %s39, 1
          %s142 = smul.addr %s141, 4
          %s143 = scalar_lea.vmem [#allocation2], %s142
          %s145 = ssub.s32 64, 64
          %146 = vsyncadd %s140, %s145
          %s147 = sadd.s32 %s23, %s22
          %s148 = smul.addr %s147, 64
          %s149 = scalar_lea.hbm %s0, %s148
          %s151 = sshll.u32 %s143, 4
          %s152 = int_to_ptr.vmem [resolvable:$true] %s151
          %154 = dma.hbm_to_vmem [thread:$0]  %s149, 64, %s152, %s140
        $region24: #{tpu_custom_call.1} parent=19 // pred_fallthru
          _
      $region20: #{tpu_custom_call.1} parent=5 // pred_fallthru
        _
      %p155 = scmp.le.s32.totalorder 1, %s15
      %p156 = scmp.lt.s32.totalorder %s15, 3
      %p157 = pnand %p155, %p156
      %p158 = pneg %p157
      // Predicated region
      $region25: #{tpu_custom_call.1} parent=5 // pred_check
        _
      $region26: #{tpu_custom_call.1} parent=5 // pred_check_branch
        %160 = sbr.rel (%p157) target = $region28
      $region27: #{tpu_custom_call.1} parent=5 // pred_region
        %s161 = ssub.s32 %s15, 1
        %s162 = sand.u32 %s42, 1
        %s163 = scalar_lea.sflag [#allocation3], %s162
        %s164 = sand.u32 %s42, 1
        %s165 = smul.addr %s164, 4
        %s166 = scalar_lea.vmem [#allocation2], %s165
        // Predicated region
        $region29: #{tpu_custom_call.1} parent=27 // pred_check
          %p167 = pneg %p55
        $region30: #{tpu_custom_call.1} parent=27 // pred_check_branch
          %169 = sbr.rel (%p167) target = $region32
        $region31: #{tpu_custom_call.1} parent=27 // pred_region
          %170 = dma.done %s163, 64
        $region32: #{tpu_custom_call.1} parent=27 // pred_fallthru
          _
        // Predicated region
        $region33: #{tpu_custom_call.1} parent=27 // pred_check
          %p171 = pneg %p76
        $region34: #{tpu_custom_call.1} parent=27 // pred_check_branch
          %173 = sbr.rel (%p171) target = $region36
        $region35: #{tpu_custom_call.1} parent=27 // pred_region
          %174 = dma.done [#allocation6], 256
        $region36: #{tpu_custom_call.1} parent=27 // pred_fallthru
          _
        %s175 = sand.u32 %s42, 1
        %s176 = scalar_lea.sflag [#allocation3], %s175
        %s177 = sand.u32 %s42, 1
        %s178 = smul.addr %s177, 4
        %s179 = scalar_lea.vmem [#allocation2], %s178
        %p180 = pneg %p55
        %p181 = pneg %p52
        %p182 = pneg %p76
        %p183 = pneg %p73
        %p184 = pneg %p104
        %p185 = pneg %p101
        %s186 = sand.u32 %s91, 1
        %s187 = scalar_lea.sflag [#allocation4], %s186
        %s188 = sand.u32 %s91, 1
        %s189 = smul.addr %s188, 4
        %s190 = scalar_lea.vmem [#allocation7], %s189
        %v192 = vld [vmem:[%s166] sm:$0xf]
        %v193 = vld [vmem:[#allocation5] sm:$0xf]
        %v194 = vld [vmem:[#allocation5 + $0x4] sm:$0xf]
        %v195 = vld [vmem:[#allocation5 + $0x8] sm:$0xf]
        %v196 = vld [vmem:[#allocation5 + $0xc] sm:$0xf]
        %v201 = vunpack.c.l.b16 %v193
        %v202 = vunpack.c.l.b16 %v194
        %v203 = vunpack.c.l.b16 %v195
        %v204 = vunpack.c.l.b16 %v196
        %v205 = vpack.c.b16 %v202, %v201
        %v206 = vpack.c.b16 %v204, %v203
        %vm209 = vcmask 261120
        %v211 = vsel %vm209, %v192, 0
        %213 = vmatprep.subr.bf16.mxu0 0
        %214 = vmatpush1.bf16.msra.mxu0 %v205
        %215 = vmatprep.subr.bf16.mxu0 0
        %216 = vmatpush1.bf16.msra.mxu0 %v206
        %217 = vmatprep.subr.bf16.mxu0 0
        %218 = vmatpush1.bf16.msra.mxu0 0
        %219 = vmatprep.subr.bf16.mxu0 0
        %220 = vmatpush1.bf16.msra.mxu0 0
        %221 = vmatprep.subr.bf16.mxu0 0
        %222 = vmatpush1.bf16.msra.mxu0 0
        %223 = vmatprep.subr.bf16.mxu0 0
        %224 = vmatpush1.bf16.msra.mxu0 0
        %225 = vmatprep.subr.bf16.mxu0 0
        %226 = vmatpush1.bf16.msra.mxu0 0
        %227 = vmatprep.subr.bf16.mxu0 0
        %228 = vmatpush1.bf16.msra.mxu0 0
        %229 = vmatprep.subr.bf16.mxu0 0
        %230 = vmatpush1.bf16.msra.mxu0 0
        %231 = vmatprep.subr.bf16.mxu0 0
        %232 = vmatpush1.bf16.msra.mxu0 0
        %233 = vmatprep.subr.bf16.mxu0 0
        %234 = vmatpush1.bf16.msra.mxu0 0
        %235 = vmatprep.subr.bf16.mxu0 0
        %236 = vmatpush1.bf16.msra.mxu0 0
        %237 = vmatprep.subr.bf16.mxu0 0
        %238 = vmatpush1.bf16.msra.mxu0 0
        %239 = vmatprep.subr.bf16.mxu0 0
        %240 = vmatpush1.bf16.msra.mxu0 0
        %241 = vmatprep.subr.bf16.mxu0 0
        %242 = vmatpush1.bf16.msra.mxu0 0
        %243 = vmatprep.subr.bf16.mxu0 0
        %244 = vmatpush1.bf16.msra.mxu0 0
        %245 = vmatprep.mubr.bf16.mxu0 0
        %246 = vmatmul.mubr.bf16.gmra.mrb[0].mxu0 %v211
        %v247 = vpop.f32.mrb[0].mxu0
        %v248 = vadd.f32 0.0, %v247
        %v249 = vpop.f32.mrb[0].mxu0
        %v250 = vpop.f32.mrb[0].mxu0
        %v251 = vpop.f32.mrb[0].mxu0
        %252 = vdwg.mxu0
        %v253 = vpack.c.bf16 %v248, %v248
        %254 = vst [vmem:[%s190] sm:$0xf] %v253
        %s255 = sand.u32 %s91, 1
        %s256 = scalar_lea.sflag [#allocation4], %s255
        %s257 = sand.u32 %s91, 1
        %s258 = smul.addr %s257, 4
        %s259 = scalar_lea.vmem [#allocation7], %s258
        // Predicated region
        $region37: #{tpu_custom_call.1} parent=27 // pred_check
          %p260 = pneg %p101
        $region38: #{tpu_custom_call.1} parent=27 // pred_check_branch
          %262 = sbr.rel (%p260) target = $region40
        $region39: #{tpu_custom_call.1} parent=27 // pred_region
          %s264 = ssub.s32 64, 64
          %265 = vsyncadd %s256, %s264
          %s266 = sadd.s32 %s25, %s24
          %s267 = smul.addr %s266, 64
          %s268 = scalar_lea.hbm %s2, %s267
          %s270 = sshll.u32 %s259, 4
          %s271 = int_to_ptr.vmem [resolvable:$true] %s270
          %273 = dma.vmem_to_hbm [thread:$0]  %s271, 64, %s268, %s256
        $region40: #{tpu_custom_call.1} parent=27 // pred_fallthru
          _
      $region28: #{tpu_custom_call.1} parent=5 // pred_fallthru
        _
      %p274 = scmp.le.s32.totalorder 2, %s15
      // Predicated region
      $region41: #{tpu_custom_call.1} parent=5 // pred_check
        %p275 = pneg %p274
      $region42: #{tpu_custom_call.1} parent=5 // pred_check_branch
        %277 = sbr.rel (%p275) target = $region44
      $region43: #{tpu_custom_call.1} parent=5 // pred_region
        %s278 = ssub.s32 %s15, 2
        // Predicated region
        $region45: #{tpu_custom_call.1} parent=43 // pred_check
          %p279 = pneg %p107
        $region46: #{tpu_custom_call.1} parent=43 // pred_check_branch
          %281 = sbr.rel (%p279) target = $region48
        $region47: #{tpu_custom_call.1} parent=43 // pred_region
          %s282 = sand.u32 %s92, 1
          %s283 = scalar_lea.sflag [#allocation4], %s282
          %s284 = sand.u32 %s92, 1
          %s285 = smul.addr %s284, 4
          %s286 = scalar_lea.vmem [#allocation7], %s285
          %287 = dma.done %s283, 64
        $region48: #{tpu_custom_call.1} parent=43 // pred_fallthru
          _
      $region44: #{tpu_custom_call.1} parent=5 // pred_fallthru
        _
    $region6: #{tpu_custom_call.1} parent=1 // loop_footer
      %s19 = sadd.s32 1, %s15
    $region7: #{tpu_custom_call.1} parent=1 // loop_footer_branch
      %14 = sbr.rel target = $region3
    $region8: #{tpu_custom_call.1} parent=1 // loop_exit
      _
    %288 = vsyncpa [#allocation3], 1
    %s289 = scalar_lea.sflag [#allocation3], 1
    %290 = vsyncpa %s289, 1
    %291 = vsyncpa [#allocation6], 1
    %292 = vsyncpa [#allocation4], 1
    %s293 = scalar_lea.sflag [#allocation4], 1
    %294 = vsyncpa %s293, 1

</llo_original>
